<compile_context>
chip_gen: v6e
topology: v6e:2x2x1
jax: 0.10.0
libtpu: 0.0.40
codegen_flags: <defaults>
</compile_context>

<pallas_src>
import jax
import jax.numpy as jnp
from jax.experimental import pallas as pl
from jax.experimental.pallas import tpu as pltpu

TRUE_VAL = 5.0      # init_logits true_val
OTHER_VAL = 0.1     # init_logits other_val
TEMPERATURE = 1.0   # softmax_straight_through_surrogate default temperature


def _round_up(x, m):
    return ((x + m - 1) // m) * m


def _categorical_st_kernel(logits_ref, expo_ref, onehot_ref, surrogate_ref):
    """One grid step: a lane-dense (C, TR) tile of independent categorical rows.

    logits_ref    : VMEM (C, TR) float32   -- class axis on sublanes
    expo_ref      : VMEM (C, TR) float32   -- i.i.d. Exp(1) noise
    onehot_ref    : VMEM (C, TR) bfloat16  -- forward output: one-hot sample
    surrogate_ref : VMEM (C, TR) float32   -- softmax STE surrogate (backward path)
    """
    logits = logits_ref[...]                      # (C, TR) f32
    expo = expo_ref[...]                          # (C, TR) f32
    C = logits.shape[0]

    # Numerically-stable unnormalized probabilities (shared by sample + surrogate
    # because TEMPERATURE == 1.0; a different T would need a separate exp for
    # the un-tempered sampling distribution).
    m = jnp.max(logits, axis=0, keepdims=True)    # cross-sublane reduce (XLU)
    e = jnp.exp(logits - m)                       # (C, TR), EUP

    # --- Categorical sample via exponential race: argmin_i E_i / p_i ---------
    # tiny eps guards E == 0 (u == 0 draw); bias is negligible.
    race = (expo + 1e-20) / e
    r_min = jnp.min(race, axis=0, keepdims=True)
    iota = jax.lax.broadcasted_iota(jnp.int32, logits.shape, dimension=0)
    # first index achieving the min (ties -> lowest index)
    idx = jnp.min(jnp.where(race <= r_min, iota, C), axis=0, keepdims=True)
    onehot_ref[...] = (iota == idx).astype(onehot_ref.dtype)

    # --- softmax straight-through surrogate: softmax(logits / T, class dim) --
    if TEMPERATURE == 1.0:
        es = e
    else:  # trace-time branch; dead for the default config
        scaled = logits * (1.0 / TEMPERATURE)
        es = jnp.exp(scaled - jnp.max(scaled, axis=0, keepdims=True))
    denom = jnp.sum(es, axis=0, keepdims=True)
    # one divide per column, broadcast multiply per element
    surrogate_ref[...] = es * (1.0 / denom)


def differentiable_categorical_forward(logits, key):
    """Forward pass of DifferentiableCategorical (grad_method='softmax').

    Returns (sampled_onehot[bf16], softmax_surrogate[f32]), both (B, L, C).
    The module's forward value is sampled_onehot; the surrogate is what the
    gradient would flow through.
    """
    B, L, C = logits.shape
    N = B * L

    # Lane-dense layout plumbing: classes -> sublanes, flattened rows -> lanes.
    logits_t = jnp.transpose(logits.reshape(N, C))            # (C, N)

    # Column tile: multiple of 128 lanes, capped at 2048 columns per grid step.
    # Per-step VMEM (double-buffered, all 4 arrays) stays well under the 32 MiB
    # scoped budget even on v7x (64 MiB physical VMEM).
    TR = min(_round_up(N, 128), 2048)
    N_pad = _round_up(N, TR)
    if N_pad != N:
        logits_t = jnp.pad(logits_t, ((0, 0), (0, N_pad - N)))

    # Exp(1) noise generated directly in the kernel layout (no extra transpose).
    expo = jax.random.exponential(key, (C, N_pad), dtype=jnp.float32)

    grid = (N_pad // TR,)
    onehot_t, surrogate_t = pl.pallas_call(
        _categorical_st_kernel,
        grid=grid,
        in_specs=[
            pl.BlockSpec((C, TR), lambda i: (0, i)),
            pl.BlockSpec((C, TR), lambda i: (0, i)),
        ],
        out_specs=(
            pl.BlockSpec((C, TR), lambda i: (0, i)),
            pl.BlockSpec((C, TR), lambda i: (0, i)),
        ),
        out_shape=(
            jax.ShapeDtypeStruct((C, N_pad), jnp.bfloat16),    # one-hot sample
            jax.ShapeDtypeStruct((C, N_pad), jnp.float32),     # softmax surrogate
        ),
        compiler_params=pltpu.CompilerParams(
            # steps are fully independent -> let v7x megacore shard them
            dimension_semantics=("parallel",),
            vmem_limit_bytes=32 * 1024 * 1024,
        ),
    )(logits_t, expo)

    # Undo the layout plumbing (drop padded columns, restore (B, L, C)).
    onehot = jnp.transpose(onehot_t[:, :N]).reshape(B, L, C)
    surrogate = jnp.transpose(surrogate_t[:, :N]).reshape(B, L, C)
    return onehot, surrogate


if __name__ == "__main__":
    key = jax.random.PRNGKey(0)
    k_seq, k_sample = jax.random.split(key)

    B, L, C = 2, 16, 8   # batch=2, seq=16, 8 token classes (nucleotide alphabet)

    # Deterministic "seed_sequence" and its one-hot encoding (onehot_fn).
    seed_sequence = jax.random.randint(k_seq, (B, L), 0, C)
    onehot = jax.nn.one_hot(seed_sequence, C, dtype=jnp.float32)     # (B, L, C)

    # init_logits: relaxation of the seed-sequence one-hot.
    logits = jnp.where(onehot == 1.0, TRUE_VAL, OTHER_VAL).astype(jnp.float32)

    sampled, surrogate = jax.block_until_ready(
        differentiable_categorical_forward(logits, k_sample))

    assert sampled.shape == (B, L, C) and surrogate.shape == (B, L, C)
    sampled_f32 = sampled.astype(jnp.float32)
    # one-hot sample: values in {0,1}, exactly one per position
    assert bool(jnp.all((sampled_f32 == 0.0) | (sampled_f32 == 1.0)))
    assert bool(jnp.allclose(jnp.sum(sampled_f32, axis=-1), 1.0))
    # surrogate must match plain-JAX softmax of logits / T along the class dim
    ref = jax.nn.softmax(logits / TEMPERATURE, axis=-1)
    assert bool(jnp.allclose(jnp.sum(surrogate, axis=-1), 1.0, atol=1e-5))
    assert bool(jnp.allclose(surrogate, ref, atol=1e-5))
    print("KERNEL_OK")
</pallas_src>

<mosaic_0001>
module attributes {stable_mosaic.version = 11 : i64} {
  func.func @_categorical_st_kernel(%arg0: i32, %arg1: memref<8x128xf32, #tpu.memory_space<vmem>>, %arg2: memref<8x128xf32, #tpu.memory_space<vmem>>, %arg3: memref<8x128xbf16, #tpu.memory_space<vmem>>, %arg4: memref<8x128xf32, #tpu.memory_space<vmem>>) attributes {dimension_semantics = [#tpu.dimension_semantics<parallel>], iteration_bounds = array<i64: 1>, scalar_prefetch = 0 : i64, scratch_operands = 0 : i64, tpu.core_type = #tpu.core_type<tc>, window_params = [{transform_indices = @transform_0, window_bounds = array<i64: 8, 128>}, {transform_indices = @transform_1, window_bounds = array<i64: 8, 128>}, {transform_indices = @transform_2, window_bounds = array<i64: 8, 128>}, {transform_indices = @transform_3, window_bounds = array<i64: 8, 128>}]} {
    %c0 = arith.constant 0 : index
    %c0_0 = arith.constant 0 : index
    %0 = vector.load %arg1[%c0, %c0_0] : memref<8x128xf32, #tpu.memory_space<vmem>>, vector<8x128xf32>
    %c0_1 = arith.constant 0 : index
    %c0_2 = arith.constant 0 : index
    %1 = vector.load %arg2[%c0_1, %c0_2] : memref<8x128xf32, #tpu.memory_space<vmem>>, vector<8x128xf32>
    %cst = arith.constant dense<0xFF800000> : vector<128xf32>
    %2 = vector.multi_reduction <maximumf>, %0, %cst [0] : vector<8x128xf32> to vector<128xf32>
    %3 = vector.shape_cast %2 : vector<128xf32> to vector<1x128xf32>
    %4 = vector.broadcast %3 : vector<1x128xf32> to vector<8x128xf32>
    %5 = arith.subf %0, %4 : vector<8x128xf32>
    %6 = math.exp %5 : vector<8x128xf32>
    %cst_3 = arith.constant 9.99999968E-21 : f32
    %7 = vector.broadcast %cst_3 : f32 to vector<8x128xf32>
    %8 = arith.addf %1, %7 : vector<8x128xf32>
    %9 = arith.divf %8, %6 : vector<8x128xf32>
    %cst_4 = arith.constant dense<0x7F800000> : vector<128xf32>
    %10 = vector.multi_reduction <minimumf>, %9, %cst_4 [0] : vector<8x128xf32> to vector<128xf32>
    %11 = vector.shape_cast %10 : vector<128xf32> to vector<1x128xf32>
    %12 = tpu.iota {dimensions = array<i32: 0>} : vector<8x128xi32>
    %13 = vector.broadcast %11 : vector<1x128xf32> to vector<8x128xf32>
    %14 = arith.cmpf ole, %9, %13 : vector<8x128xf32>
    %c8_i32 = arith.constant 8 : i32
    %15 = vector.broadcast %c8_i32 : i32 to vector<8x128xi32>
    %16 = arith.select %14, %12, %15 : vector<8x128xi1>, vector<8x128xi32>
    %cst_5 = arith.constant dense<2147483647> : vector<128xi32>
    %17 = vector.multi_reduction <minsi>, %16, %cst_5 [0] : vector<8x128xi32> to vector<128xi32>
    %18 = vector.shape_cast %17 : vector<128xi32> to vector<1x128xi32>
    %19 = vector.broadcast %18 : vector<1x128xi32> to vector<8x128xi32>
    %20 = arith.cmpi eq, %12, %19 : vector<8x128xi32>
    %21 = arith.extui %20 : vector<8x128xi1> to vector<8x128xi32>
    %22 = arith.sitofp %21 : vector<8x128xi32> to vector<8x128xf32>
    %23 = arith.truncf %22 : vector<8x128xf32> to vector<8x128xbf16>
    %c0_6 = arith.constant 0 : index
    %c0_7 = arith.constant 0 : index
    %24 = vector.load %arg3[%c0_6, %c0_7] : memref<8x128xbf16, #tpu.memory_space<vmem>>, vector<8x128xbf16>
    tpu.vector_store %arg3[%c0_6, %c0_7], %23 {strides = array<i32>} : memref<8x128xbf16, #tpu.memory_space<vmem>>, vector<8x128xbf16>,
    %cst_8 = arith.constant dense<0.000000e+00> : vector<128xf32>
    %25 = vector.multi_reduction <add>, %6, %cst_8 [0] : vector<8x128xf32> to vector<128xf32>
    %26 = vector.shape_cast %25 : vector<128xf32> to vector<1x128xf32>
    %cst_9 = arith.constant 1.000000e+00 : f32
    %27 = vector.broadcast %cst_9 : f32 to vector<1x128xf32>
    %28 = arith.divf %27, %26 : vector<1x128xf32>
    %29 = vector.broadcast %28 : vector<1x128xf32> to vector<8x128xf32>
    %30 = arith.mulf %6, %29 : vector<8x128xf32>
    %c0_10 = arith.constant 0 : index
    %c0_11 = arith.constant 0 : index
    %31 = vector.load %arg4[%c0_10, %c0_11] : memref<8x128xf32, #tpu.memory_space<vmem>>, vector<8x128xf32>
    tpu.vector_store %arg4[%c0_10, %c0_11], %30 {strides = array<i32>} : memref<8x128xf32, #tpu.memory_space<vmem>>, vector<8x128xf32>,
    return
  }
  func.func @transform_0(%arg0: i32) -> (i32, i32) {
    %c0_i32 = arith.constant 0 : i32
    %c0_i32_0 = arith.constant 0 : i32
    return %c0_i32, %arg0 : i32, i32
  }
  func.func @transform_1(%arg0: i32) -> (i32, i32) {
    %c0_i32 = arith.constant 0 : i32
    %c0_i32_0 = arith.constant 0 : i32
    return %c0_i32, %arg0 : i32, i32
  }
  func.func @transform_2(%arg0: i32) -> (i32, i32) {
    %c0_i32 = arith.constant 0 : i32
    %c0_i32_0 = arith.constant 0 : i32
    return %c0_i32, %arg0 : i32, i32
  }
  func.func @transform_3(%arg0: i32) -> (i32, i32) {
    %c0_i32 = arith.constant 0 : i32
    %c0_i32_0 = arith.constant 0 : i32
    return %c0_i32, %arg0 : i32, i32
  }
}

</mosaic_0001>

<llo_original>
// kernel: tpu_custom_call.1
$region0: #{tpu_custom_call.1}
  #allocation0 [shape = 'u32[]', space=smem, size = 0x4, offset = 0x4, fixed_abs, tag = 'smem constant byte address 0x4 - core index']
  #allocation1 [shape = 'u32[144,128]{1,0:T(1,128)}', space=vmem, size = 0x12000, scoped, tag = 'internal scratch']
  %s0 = inlined_call_operand.hbm [shape: f32[8,128], index: 0, kind: input, shape index: {}]
  %s1 = inlined_call_operand.hbm [shape: f32[8,128], index: 1, kind: input, shape index: {}]
  %s2 = inlined_call_operand.hbm [shape: bf16[8,128], index: 2, kind: output, shape index: {0}]
  %s3 = inlined_call_operand.hbm [shape: f32[8,128], index: 3, kind: output, shape index: {1}]
  %4 = xla_tuple %s2, %s3
  %s5 = sld [smem:[#allocation0]]
  $region34: #{tpu_custom_call.1} parent=0
    _
  %s7 = ssub.s32 1, %s5
  %s8 = scalar_select 0, %s7, %s5
  $region1: #{tpu_custom_call.1} parent=0
    #allocation2 [shape = 'u8[4096]{0}', space=vmem, size = 0x1000, scoped, tag = 'input window, operand 0, single buffered']
    #allocation3 [shape = 's32[1]{0}', space=sflag, size = 0x4, scoped, tag = 'scoped memory for tpu_custom_call.1']
    #allocation4 [shape = 's32[1]{0}', space=sflag, size = 0x4, scoped, tag = 'scoped memory for tpu_custom_call.1']
    #allocation5 [shape = 'u8[4096]{0}', space=vmem, size = 0x1000, scoped, tag = 'input window, operand 1, single buffered']
    #allocation6 [shape = 's32[1]{0}', space=sflag, size = 0x4, scoped, tag = 'scoped memory for tpu_custom_call.1']
    #allocation7 [shape = 'u8[2048]{0}', space=vmem, size = 0x800, scoped, tag = 'output window, operand 0, single buffered']
    #allocation8 [shape = 'u8[4096]{0}', space=vmem, size = 0x1000, scoped, tag = 'output window, operand 1, single buffered']
    #allocation9 [shape = 's32[1]{0}', space=sflag, size = 0x4, scoped, tag = 'scoped memory for tpu_custom_call.1']
    %9 = vsyncpa [#allocation3], 0
    %10 = vsyncpa [#allocation6], 0
    %11 = vsyncpa [#allocation4], 0
    %12 = vsyncpa [#allocation9], 0
    // Predicated region
    $region2: #{tpu_custom_call.1} parent=1 // pred_check
      _
    $region3: #{tpu_custom_call.1} parent=1 // pred_check_branch
      %14 = sbr.rel (0) target = $region5
    $region4: #{tpu_custom_call.1} parent=1 // pred_region
      %s16 = ssub.s32 128, 128
      %17 = vsyncadd [#allocation3], %s16
      %s19 = sshll.u32 [#allocation2], 4
      %s20 = int_to_ptr.vmem [resolvable:$true] %s19
      %22 = dma.hbm_to_vmem [thread:$0]  %s0, 128, %s20, [#allocation3]
    $region5: #{tpu_custom_call.1} parent=1 // pred_fallthru
      _
    // Predicated region
    $region6: #{tpu_custom_call.1} parent=1 // pred_check
      _
    $region7: #{tpu_custom_call.1} parent=1 // pred_check_branch
      %24 = sbr.rel (0) target = $region9
    $region8: #{tpu_custom_call.1} parent=1 // pred_region
      %s26 = ssub.s32 128, 128
      %27 = vsyncadd [#allocation6], %s26
      %s29 = sshll.u32 [#allocation5], 4
      %s30 = int_to_ptr.vmem [resolvable:$true] %s29
      %32 = dma.hbm_to_vmem [thread:$0]  %s1, 128, %s30, [#allocation6]
    $region9: #{tpu_custom_call.1} parent=1 // pred_fallthru
      _
    // Predicated region
    $region10: #{tpu_custom_call.1} parent=1 // pred_check
      _
    $region11: #{tpu_custom_call.1} parent=1 // pred_check_branch
      %34 = sbr.rel (0) target = $region13
    $region12: #{tpu_custom_call.1} parent=1 // pred_region
      %35 = dma.done [#allocation3], 128
    $region13: #{tpu_custom_call.1} parent=1 // pred_fallthru
      _
    // Predicated region
    $region14: #{tpu_custom_call.1} parent=1 // pred_check
      _
    $region15: #{tpu_custom_call.1} parent=1 // pred_check_branch
      %37 = sbr.rel (0) target = $region17
    $region16: #{tpu_custom_call.1} parent=1 // pred_region
      %38 = dma.done [#allocation6], 128
    $region17: #{tpu_custom_call.1} parent=1 // pred_fallthru
      _
    %v39 = vld [vmem:[#allocation2] sm:$0xff]
    %v40 = vld [vmem:[#allocation5] sm:$0xff]
    %v41 = vrot.slane %v39, 4
    %v42 = vmax.f32 %v39, %v41
    %v43 = vrot.slane %v42, 2
    %v44 = vmax.f32 %v42, %v43
    %v45 = vrot.slane %v44, 1
    %v46 = vmax.f32 %v44, %v45
    %v47 = vsub.f32 %v39, %v46
    %v48 = vmul.f32 %v47, 1.442695
    %v49 = vpow.pop %v48
    %v50 = vadd.f32 %v40, 1e-20
    %v51 = vrcp.pop %v49
    %v52 = vmul.f32 %v50, %v51
    %v53 = vrot.slane %v52, 4
    %v54 = vmin.f32 %v52, %v53
    %v55 = vrot.slane %v54, 2
    %v56 = vmin.f32 %v54, %v55
    %v57 = vrot.slane %v56, 1
    %v58 = vmin.f32 %v56, %v57
    %v59 = vlaneseq
    %v60 = vshrl.u32 %v59, 7
    %vm61 = vcmp.le.f32.partialorder %v52, %v58
    %v62 = vsel %vm61, %v60, 8
    %v63 = vrot.slane %v62, 4
    %vm64 = vcmp.lt.s32.totalorder %v62, %v63
    %v65 = vsel %vm64, %v62, %v63
    %v66 = vrot.slane %v65, 2
    %vm67 = vcmp.lt.s32.totalorder %v65, %v66
    %v68 = vsel %vm67, %v65, %v66
    %v69 = vrot.slane %v68, 1
    %vm70 = vcmp.lt.s32.totalorder %v68, %v69
    %v71 = vsel %vm70, %v68, %v69
    %vm72 = vcmp.eq.s32.totalorder %v60, %v71
    %v73 = vsel %vm72, 1, 0
    %v74 = vcvt.s32.f32 %v73
    %v75 = vpack.c.bf16 %v74, %v74
    %76 = vst [vmem:[#allocation7] sm:$0xf] %v75
    %v77 = vrot.slane %v49, 4
    %v78 = vadd.f32 %v49, %v77
    %v79 = vrot.slane %v78, 2
    %v80 = vadd.f32 %v78, %v79
    %v81 = vrot.slane %v80, 1
    %v82 = vadd.f32 %v80, %v81
    %v83 = vrcp.pop %v82
    %v84 = vmul.f32 1.0, %v83
    %v85 = vmul.f32 %v49, %v84
    %86 = vst [vmem:[#allocation8] sm:$0xff] %v85
    // Predicated region
    $region18: #{tpu_custom_call.1} parent=1 // pred_check
      _
    $region19: #{tpu_custom_call.1} parent=1 // pred_check_branch
      %88 = sbr.rel (0) target = $region21
    $region20: #{tpu_custom_call.1} parent=1 // pred_region
      %s90 = ssub.s32 64, 64
      %91 = vsyncadd [#allocation4], %s90
      %s93 = sshll.u32 [#allocation7], 4
      %s94 = int_to_ptr.vmem [resolvable:$true] %s93
      %96 = dma.vmem_to_hbm [thread:$0]  %s94, 64, %s2, [#allocation4]
    $region21: #{tpu_custom_call.1} parent=1 // pred_fallthru
      _
    // Predicated region
    $region22: #{tpu_custom_call.1} parent=1 // pred_check
      _
    $region23: #{tpu_custom_call.1} parent=1 // pred_check_branch
      %98 = sbr.rel (0) target = $region25
    $region24: #{tpu_custom_call.1} parent=1 // pred_region
      %s100 = ssub.s32 128, 128
      %101 = vsyncadd [#allocation9], %s100
      %s103 = sshll.u32 [#allocation8], 4
      %s104 = int_to_ptr.vmem [resolvable:$true] %s103
      %106 = dma.vmem_to_hbm [thread:$0]  %s104, 128, %s3, [#allocation9]
    $region25: #{tpu_custom_call.1} parent=1 // pred_fallthru
      _
    // Predicated region
    $region26: #{tpu_custom_call.1} parent=1 // pred_check
      _
    $region27: #{tpu_custom_call.1} parent=1 // pred_check_branch
      %108 = sbr.rel (0) target = $region29
    $region28: #{tpu_custom_call.1} parent=1 // pred_region
      %109 = dma.done [#allocation4], 64
    $region29: #{tpu_custom_call.1} parent=1 // pred_fallthru
      _
    // Predicated region
    $region30: #{tpu_custom_call.1} parent=1 // pred_check
      _
    $region31: #{tpu_custom_call.1} parent=1 // pred_check_branch
      %111 = sbr.rel (0) target = $region33
    $region32: #{tpu_custom_call.1} parent=1 // pred_region
      %112 = dma.done [#allocation9], 128
    $region33: #{tpu_custom_call.1} parent=1 // pred_fallthru
      _
    %113 = vsyncpa [#allocation3], 1
    %114 = vsyncpa [#allocation6], 1
    %115 = vsyncpa [#allocation4], 1
    %116 = vsyncpa [#allocation9], 1

</llo_original>
